<compile_context>
chip_gen: v7x
topology: tpu7x:2x2x1
jax: 0.10.0
libtpu: 0.0.40
codegen_flags: <defaults>
</compile_context>

<pallas_src>
import math

import jax
import jax.numpy as jnp
from jax.experimental import pallas as pl
from jax.experimental.pallas import tpu as pltpu


def make_positional_encoding(d_model: int, max_len: int = 20) -> jnp.ndarray:
    """Build the pe buffer exactly like the PyTorch __init__."""
    position = jnp.arange(max_len, dtype=jnp.float32)[:, None]            # (max_len, 1)
    div_term = jnp.exp(
        jnp.arange(0, d_model, 2, dtype=jnp.float32) * -(math.log(10000.0) / d_model)
    )                                                                      # (ceil(D/2),)
    angles = position * div_term                                           # (max_len, ceil(D/2))
    pe = jnp.zeros((max_len, 1, d_model), dtype=jnp.float32)
    pe = pe.at[:, 0, 0::2].set(jnp.sin(angles))
    pe = pe.at[:, 0, 1::2].set(jnp.cos(angles)[:, : d_model // 2])
    return pe


# ---------------------------------------------------------------------------
# Kernels (operate on lane-dense (TS, B*D) blocks)
# ---------------------------------------------------------------------------

def _pe_add_kernel(x_ref, pe_ref, o_ref):
    o_ref[...] = x_ref[...] + pe_ref[...]


def _pe_add_dropout_kernel(x_ref, pe_ref, m_ref, o_ref):
    # m_ref already holds keep/(1-p): a single fused multiply applies dropout.
    o_ref[...] = (x_ref[...] + pe_ref[...]) * m_ref[...]


# ---------------------------------------------------------------------------
# Wrapper
# ---------------------------------------------------------------------------

def _choose_tile_rows(S: int, BD: int, dtype) -> int:
    """Largest row-tile that keeps double-buffered blocks well inside VMEM.

    Budget ~8 MiB total across (x, pe, mask, out) x 2 buffers — comfortably
    under the default scoped VMEM limit on v5e (16 MiB), v6e (32 MiB) and
    v7x (32 MiB of 64 MiB physical).
    """
    bytes_per_row = max(1, BD * jnp.dtype(dtype).itemsize)
    budget = 8 * 1024 * 1024
    max_rows = budget // (8 * bytes_per_row)          # 2 bufs * 4 arrays
    max_rows = max(8, int(max_rows))
    if S <= max_rows:
        return S                                      # single block: full-dim exception
    return (max_rows // 8) * 8                        # keep sublane (8) divisibility


def positional_encoding_forward(x, pe, *, p: float = 0.1,
                                training: bool = False, rng=None):
    """x: (S, B, D). pe: (max_len, 1, D). Returns (S, B, D)."""
    S, B, D = x.shape
    BD = B * D

    # Lane-dense 2D views: x2[s, b*D+d] = x[s,b,d]; pe2[s, b*D+d] = pe[s,0,d].
    x2 = x.reshape(S, BD)
    pe2 = jnp.tile(pe[:S, 0, :].astype(x.dtype), (1, B))   # (S, BD), tiny glue

    TS = _choose_tile_rows(S, BD, x.dtype)
    grid = (pl.cdiv(S, TS),)
    row_spec = pl.BlockSpec((TS, BD), lambda i: (i, 0))
    out_shape = jax.ShapeDtypeStruct((S, BD), x.dtype)
    cparams = pltpu.CompilerParams(dimension_semantics=("parallel",))

    if (not training) or p == 0.0:
        out2 = pl.pallas_call(
            _pe_add_kernel,
            out_shape=out_shape,
            grid=grid,
            in_specs=[row_spec, row_spec],
            out_specs=row_spec,
            compiler_params=cparams,
        )(x2, pe2)
        return out2.reshape(S, B, D)

    if p >= 1.0:
        # Dropout with p=1 zeroes everything (avoid 1/(1-p) overflow).
        return jnp.zeros_like(x)

    if rng is None:
        rng = jax.random.PRNGKey(0)
    keep = jax.random.bernoulli(rng, 1.0 - p, (S, BD))
    scale = jnp.asarray(1.0 / (1.0 - p), dtype=x.dtype)
    mask = keep.astype(x.dtype) * scale                     # keep/(1-p), fused in-kernel

    out2 = pl.pallas_call(
        _pe_add_dropout_kernel,
        out_shape=out_shape,
        grid=grid,
        in_specs=[row_spec, row_spec, row_spec],
        out_specs=row_spec,
        compiler_params=cparams,
    )(x2, pe2, mask)
    return out2.reshape(S, B, D)


if __name__ == "__main__":
    # Small shapes consistent with the module: seq=8, batch=2, d_model=32.
    S, B, D = 8, 2, 32
    MAX_LEN = 20

    key = jax.random.PRNGKey(0)
    x = jax.random.normal(key, (S, B, D), dtype=jnp.float32)
    pe = make_positional_encoding(D, MAX_LEN)

    # Eval-mode forward (dropout = identity), matching module.eval() semantics.
    out = positional_encoding_forward(x, pe, p=0.1, training=False)
    out = jax.block_until_ready(out)

    ref = x + pe[:S]
    assert out.shape == (S, B, D)
    assert jnp.allclose(out, ref, atol=1e-6), "mismatch vs reference (eval path)"

    # Training-mode forward (fused add + dropout mask/scale in the kernel).
    drop_key = jax.random.PRNGKey(1234)
    out_tr = positional_encoding_forward(x, pe, p=0.1, training=True, rng=drop_key)
    out_tr = jax.block_until_ready(out_tr)
    assert out_tr.shape == (S, B, D)
    assert bool(jnp.all(jnp.isfinite(out_tr)))
    # Every training-mode element is either 0 (dropped) or ref/(1-p) (kept).
    scaled = ref / (1.0 - 0.1)
    ok = jnp.isclose(out_tr, 0.0, atol=1e-6) | jnp.isclose(out_tr, scaled, atol=1e-5)
    assert bool(jnp.all(ok)), "mismatch vs reference (training path)"

    print("KERNEL_OK")
</pallas_src>

<mosaic_0001>
module attributes {stable_mosaic.version = 11 : i64} {
  func.func @_pe_add_kernel(%arg0: i32, %arg1: memref<8x64xf32, #tpu.memory_space<vmem>>, %arg2: memref<8x64xf32, #tpu.memory_space<vmem>>, %arg3: memref<8x64xf32, #tpu.memory_space<vmem>>) attributes {dimension_semantics = [#tpu.dimension_semantics<parallel>], iteration_bounds = array<i64: 1>, scalar_prefetch = 0 : i64, scratch_operands = 0 : i64, tpu.core_type = #tpu.core_type<tc>, window_params = [{transform_indices = @transform_0, window_bounds = array<i64: 8, 64>}, {transform_indices = @transform_1, window_bounds = array<i64: 8, 64>}, {transform_indices = @transform_2, window_bounds = array<i64: 8, 64>}]} {
    %c0 = arith.constant 0 : index
    %c0_0 = arith.constant 0 : index
    %0 = vector.load %arg1[%c0, %c0_0] : memref<8x64xf32, #tpu.memory_space<vmem>>, vector<8x64xf32>
    %c0_1 = arith.constant 0 : index
    %c0_2 = arith.constant 0 : index
    %1 = vector.load %arg2[%c0_1, %c0_2] : memref<8x64xf32, #tpu.memory_space<vmem>>, vector<8x64xf32>
    %2 = arith.addf %0, %1 : vector<8x64xf32>
    %c0_3 = arith.constant 0 : index
    %c0_4 = arith.constant 0 : index
    %3 = vector.load %arg3[%c0_3, %c0_4] : memref<8x64xf32, #tpu.memory_space<vmem>>, vector<8x64xf32>
    tpu.vector_store %arg3[%c0_3, %c0_4], %2 {strides = array<i32>} : memref<8x64xf32, #tpu.memory_space<vmem>>, vector<8x64xf32>,
    return
  }
  func.func @transform_0(%arg0: i32) -> (i32, i32) {
    %c0_i32 = arith.constant 0 : i32
    %c0_i32_0 = arith.constant 0 : i32
    return %arg0, %c0_i32 : i32, i32
  }
  func.func @transform_1(%arg0: i32) -> (i32, i32) {
    %c0_i32 = arith.constant 0 : i32
    %c0_i32_0 = arith.constant 0 : i32
    return %arg0, %c0_i32 : i32, i32
  }
  func.func @transform_2(%arg0: i32) -> (i32, i32) {
    %c0_i32 = arith.constant 0 : i32
    %c0_i32_0 = arith.constant 0 : i32
    return %arg0, %c0_i32 : i32, i32
  }
}

</mosaic_0001>

<llo_original>
// kernel: tpu_custom_call.1
$region0: #{tpu_custom_call.1}
  #allocation0 [shape = 'u32[]', space=smem, size = 0x4, offset = 0x4, fixed_abs, tag = 'smem constant byte address 0x4 - core index']
  #allocation1 [shape = 'u32[144,128]{1,0:T(1,128)}', space=vmem, size = 0x12000, scoped, tag = 'internal scratch']
  %s0 = inlined_call_operand.hbm [shape: f32[8,64], index: 0, kind: input, shape index: {}]
  %s1 = inlined_call_operand.hbm [shape: f32[8,64], index: 1, kind: input, shape index: {}]
  %s2 = inlined_call_operand.hbm [shape: f32[8,64], index: 2, kind: output, shape index: {}]
  %s3 = sld [smem:[#allocation0]]
  $region26: #{tpu_custom_call.1} parent=0
    _
  %s5 = ssub.s32 1, %s3
  %s6 = scalar_select 0, %s5, %s3
  $region1: #{tpu_custom_call.1} parent=0
    #allocation2 [shape = 'u8[4096]{0}', space=vmem, size = 0x1000, scoped, tag = 'input window, operand 0, single buffered']
    #allocation3 [shape = 's32[1]{0}', space=sflag, size = 0x4, scoped, tag = 'scoped memory for tpu_custom_call.1']
    #allocation4 [shape = 's32[1]{0}', space=sflag, size = 0x4, scoped, tag = 'scoped memory for tpu_custom_call.1']
    #allocation5 [shape = 'u8[4096]{0}', space=vmem, size = 0x1000, scoped, tag = 'input window, operand 1, single buffered']
    #allocation6 [shape = 's32[1]{0}', space=sflag, size = 0x4, scoped, tag = 'scoped memory for tpu_custom_call.1']
    #allocation7 [shape = 'u8[4096]{0}', space=vmem, size = 0x1000, scoped, tag = 'output window, operand 0, single buffered']
    %7 = vsyncpa [#allocation3], 0
    %8 = vsyncpa [#allocation6], 0
    %9 = vsyncpa [#allocation4], 0
    // Predicated region
    $region2: #{tpu_custom_call.1} parent=1 // pred_check
      _
    $region3: #{tpu_custom_call.1} parent=1 // pred_check_branch
      %11 = sbr.rel (0) target = $region5
    $region4: #{tpu_custom_call.1} parent=1 // pred_region
      %s13 = ssub.s32 128, 128
      %14 = vsyncadd [#allocation3], %s13
      %s16 = sshll.u32 [#allocation2], 4
      %s17 = int_to_ptr.vmem [resolvable:$true] %s16
      %19 = dma.hbm_to_vmem [thread:$0]  %s0, 128, %s17, [#allocation3]
    $region5: #{tpu_custom_call.1} parent=1 // pred_fallthru
      _
    // Predicated region
    $region6: #{tpu_custom_call.1} parent=1 // pred_check
      _
    $region7: #{tpu_custom_call.1} parent=1 // pred_check_branch
      %21 = sbr.rel (0) target = $region9
    $region8: #{tpu_custom_call.1} parent=1 // pred_region
      %s23 = ssub.s32 128, 128
      %24 = vsyncadd [#allocation6], %s23
      %s26 = sshll.u32 [#allocation5], 4
      %s27 = int_to_ptr.vmem [resolvable:$true] %s26
      %29 = dma.hbm_to_vmem [thread:$0]  %s1, 128, %s27, [#allocation6]
    $region9: #{tpu_custom_call.1} parent=1 // pred_fallthru
      _
    // Predicated region
    $region10: #{tpu_custom_call.1} parent=1 // pred_check
      _
    $region11: #{tpu_custom_call.1} parent=1 // pred_check_branch
      %31 = sbr.rel (0) target = $region13
    $region12: #{tpu_custom_call.1} parent=1 // pred_region
      %32 = dma.done [#allocation3], 128
    $region13: #{tpu_custom_call.1} parent=1 // pred_fallthru
      _
    // Predicated region
    $region14: #{tpu_custom_call.1} parent=1 // pred_check
      _
    $region15: #{tpu_custom_call.1} parent=1 // pred_check_branch
      %34 = sbr.rel (0) target = $region17
    $region16: #{tpu_custom_call.1} parent=1 // pred_region
      %35 = dma.done [#allocation6], 128
    $region17: #{tpu_custom_call.1} parent=1 // pred_fallthru
      _
    %v36 = vld [vmem:[#allocation2] sm:$0xff]
    %v37 = vld [vmem:[#allocation5] sm:$0xff]
    %v38 = vadd.f32 %v36, %v37
    %vm39 = vcmask 523264
    %40 = vst.msk [vmem:[#allocation7] sm:$0xff] %vm39, %v38
    // Predicated region
    $region18: #{tpu_custom_call.1} parent=1 // pred_check
      _
    $region19: #{tpu_custom_call.1} parent=1 // pred_check_branch
      %42 = sbr.rel (0) target = $region21
    $region20: #{tpu_custom_call.1} parent=1 // pred_region
      %s44 = ssub.s32 128, 128
      %45 = vsyncadd [#allocation4], %s44
      %s47 = sshll.u32 [#allocation7], 4
      %s48 = int_to_ptr.vmem [resolvable:$true] %s47
      %50 = dma.vmem_to_hbm [thread:$0]  %s48, 128, %s2, [#allocation4]
    $region21: #{tpu_custom_call.1} parent=1 // pred_fallthru
      _
    // Predicated region
    $region22: #{tpu_custom_call.1} parent=1 // pred_check
      _
    $region23: #{tpu_custom_call.1} parent=1 // pred_check_branch
      %52 = sbr.rel (0) target = $region25
    $region24: #{tpu_custom_call.1} parent=1 // pred_region
      %53 = dma.done [#allocation4], 128
    $region25: #{tpu_custom_call.1} parent=1 // pred_fallthru
      _
    %54 = vsyncpa [#allocation3], 1
    %55 = vsyncpa [#allocation6], 1
    %56 = vsyncpa [#allocation4], 1

</llo_original>
